<compile_context>
chip_gen: v5e
topology: v5e:2x2
jax: 0.10.0
libtpu: 0.0.40
codegen_flags: <defaults>
</compile_context>

<pallas_src>
import jax
import jax.numpy as jnp
from jax.experimental import pallas as pl
from jax.experimental.pallas import tpu as pltpu


def _dma_copy_kernel(x_hbm, o_hbm, sem):
    # Single HBM -> HBM DMA identity copy of the whole slab.
    cp = pltpu.make_async_copy(x_hbm, o_hbm, sem)
    cp.start()
    cp.wait()


def _pallas_materialize(x):
    """Materialize `x` into a fresh HBM buffer via one DMA (identity copy)."""
    nbytes = x.size * jnp.dtype(x.dtype).itemsize
    return pl.pallas_call(
        _dma_copy_kernel,
        out_shape=jax.ShapeDtypeStruct(x.shape, x.dtype),
        in_specs=[pl.BlockSpec(memory_space=pl.ANY)],
        out_specs=pl.BlockSpec(memory_space=pl.ANY),
        scratch_shapes=[pltpu.SemaphoreType.DMA],
        cost_estimate=pl.CostEstimate(
            flops=0,
            transcendentals=0,
            bytes_accessed=2 * nbytes,
        ),
    )(x)


def rnn_out_forward(inputs, *, materialize=False):
    """JAX/Pallas equivalent of RNN_Out.forward.

    inputs: tuple (outputs, output)
      outputs: (batch, seq, hidden)   -- ignored, matching the PyTorch module
      output:  (1, batch, hidden)     -- squeezed to (batch, hidden)

    materialize=False (default): metadata-only squeeze, no kernel, no HBM
    traffic.  materialize=True: force a fresh output buffer via one
    HBM->HBM DMA Pallas kernel.
    """
    outputs, output = inputs
    del outputs  # discarded, exactly like the reference module

    # torch.squeeze: drop all size-1 dims.  Metadata-only -> plain reshape.
    squeezed_shape = tuple(d for d in output.shape if d != 1)
    x = output.reshape(squeezed_shape)

    if not materialize:
        return x

    if x.ndim == 0:
        # TODO(synk): 0-D squeeze result has no meaningful copy to kernelize;
        # return the metadata-only result.
        return x

    return _pallas_materialize(x)


if __name__ == "__main__":
    key = jax.random.PRNGKey(0)
    k1, k2 = jax.random.split(key)

    batch, seq, hidden = 2, 8, 32
    outputs = jax.random.normal(k1, (batch, seq, hidden), dtype=jnp.float32)
    output = jax.random.normal(k2, (1, batch, hidden), dtype=jnp.float32)

    ref = jax.block_until_ready(jnp.squeeze(output))

    # Default (common-case) path: metadata-only squeeze, no kernel emitted.
    fast = jax.block_until_ready(rnn_out_forward((outputs, output)))
    assert fast.shape == (batch, hidden)
    assert jnp.array_equal(fast, ref)

    # Materializing path: exercises the single HBM->HBM DMA kernel once.
    result = jax.block_until_ready(
        rnn_out_forward((outputs, output), materialize=True)
    )
    assert result.shape == (batch, hidden)
    assert jnp.array_equal(result, ref)

    print("KERNEL_OK")
</pallas_src>

<mosaic_0001>
module attributes {stable_mosaic.version = 11 : i64} {
  func.func @_dma_copy_kernel(%arg0: memref<2x32xf32, #tpu.memory_space<any>>, %arg1: memref<2x32xf32, #tpu.memory_space<any>>, %arg2: memref<!tpu.dma_semaphore, #tpu.memory_space<semaphore_mem>>) attributes {dimension_semantics = [], scalar_prefetch = 0 : i64, scratch_operands = 1 : i64, tpu.core_type = #tpu.core_type<tc>} {
    tpu.enqueue_dma source(%arg0 : memref<2x32xf32, #tpu.memory_space<any>>) target(%arg1 : memref<2x32xf32, #tpu.memory_space<any>>) target_semaphore(%arg2 : memref<!tpu.dma_semaphore, #tpu.memory_space<semaphore_mem>>)
    tpu.wait_dma2 semaphore(%arg2 : memref<!tpu.dma_semaphore, #tpu.memory_space<semaphore_mem>>) src(%arg0 : memref<2x32xf32, #tpu.memory_space<any>>) dst(%arg1 : memref<2x32xf32, #tpu.memory_space<any>>)
    return
  }
}

</mosaic_0001>

<llo_original>
// kernel: tpu_custom_call.1
$region0: #{tpu_custom_call.1}
  #allocation0 [shape = 'u32[]', space=smem, size = 0x4, offset = 0x4, fixed_abs, tag = 'smem constant byte address 0x4 - core index']
  #allocation1 [shape = 'u32[72,128]{1,0:T(1,128)}', space=vmem, size = 0x9000, scoped, tag = 'internal scratch']
  #allocation2 [shape = 's32[1]{0}', space=sflag, size = 0x4, scoped, tag = 'scratch operand']
  #allocation3 [shape = 's32[]', space=sflag, size = 0x4, offset = 0, fixed_abs, tag = 'sflag constant byte address 0x0 - dummy sync flag']
  #allocation4 [shape = 'u32[0]{0}', space=smem, size = 0, offset = 0, fixed_abs, tag = 'smem constant byte address 0x0 - null']
  %s0 = inlined_call_operand.hbm [shape: f32[2,32], index: 0, kind: input, shape index: {}]
  %s1 = inlined_call_operand.hbm [shape: f32[2,32], index: 1, kind: output, shape index: {}]
  %s2 = sld [smem:[#allocation0]]
  $region2: #{tpu_custom_call.1} parent=0
    _
  %s4 = ssub.s32 1, %s2
  %s5 = scalar_select 0, %s4, %s2
  %s7 = sshll.u32 1, 14
  %s8 = sxor.u32 4294967295, %s7
  %s10 = sshll.u32 %s0, 4
  %s11 = int_to_ptr.hbm [resolvable:$true] %s10
  %s12 = sshll.u32 %s1, 4
  %s13 = int_to_ptr.hbm [resolvable:$true] %s12
  %16 = dma.general %s11, 32, %s13, [#allocation2], [#allocation3], [#allocation4], 0, 0
  %s17 = smul.u32 2, 1
  %s18 = sshll.u32 %s17, 4
  %19 = dma.done [#allocation2], %s18
  %20 = vsyncmov [#allocation2]
  %s21 = vpop.sfrf %20
  %p22 = scmp.eq.s32.totalorder %s21, 0
  %p23 = pneg %p22
  %25 = shalt.err (%p23)

</llo_original>
